<compile_context>
chip_gen: v7x
topology: tpu7x:2x2x1
jax: 0.10.0
libtpu: 0.0.40
codegen_flags: <defaults>
</compile_context>

<pallas_src>
import functools
import math

import jax
import jax.numpy as jnp
from jax.experimental import pallas as pl
from jax.experimental.pallas import tpu as pltpu


def _round_up(n: int, m: int) -> int:
    return ((n + m - 1) // m) * m


def _pick_tb(batch: int, row_elems: int, itemsize: int,
             target_bytes: int = 2 << 20,
             min_block_bytes: int = 256 << 10) -> int:
    """Rows per block: ~2 MiB blocks, legal sublane multiple, enough grid steps
    for megacore sharding and DMA/compute overlap."""
    mult = 32 if itemsize == 1 else (16 if itemsize == 2 else 8)
    row_bytes = max(1, row_elems * itemsize)
    tb = max(mult, (target_bytes // row_bytes) // mult * mult)
    tb = min(tb, _round_up(batch, mult))
    # Prefer >= 4 grid steps (then >= 2) while each block stays >= min_block_bytes.
    for min_steps in (4, 2):
        while (pl.cdiv(batch, tb) < min_steps and tb > mult
               and (tb // 2) * row_bytes >= min_block_bytes):
            tb = max(mult, (tb // 2) // mult * mult)
    return tb


# ----------------------------------------------------------------------------
# Kernels
# ----------------------------------------------------------------------------
def _reverse_kernel(x_ref, y_ref, *, delta, s):
    # Reference: e = exp(2x/s); y = (e*(1+delta) - delta) / (1+e)
    #                             = (1+2*delta)*sigmoid(2x/s) - delta
    #                             = 0.5 + (0.5+delta)*tanh(x/s)   <- one EUP push
    x = x_ref[...].astype(jnp.float32)
    y = 0.5 + (0.5 + delta) * jnp.tanh(x * (1.0 / s))
    y_ref[...] = y.astype(y_ref.dtype)


def _forward_kernel(x_ref, pdj_ref, sldj_ref,
                    x1_ref, pdj_out_ref, sldj_out_ref, *, delta, s):
    # x1      = (log(x+delta) - log(1+delta-x)) * s/2
    # sj      = (s/2)*(1+2*delta) / ((x+delta)*(1+delta-x))    (positive in-domain)
    # log_sj  = log(s/2*(1+2*delta)) - log(x+delta) - log(1+delta-x)
    # pdj    *= exp(sum(log_sj));   sldj += sum(log_sj)
    x = x_ref[...].astype(jnp.float32)
    la = jnp.log(x + delta)
    lb = jnp.log(1.0 + delta - x)

    x1 = (la - lb) * (0.5 * s)

    log_c = math.log(0.5 * s * (1.0 + 2.0 * delta))
    log_sj = log_c - la - lb
    sum_log_sj = jnp.sum(log_sj, axis=-1, keepdims=True)

    pdj = pdj_ref[...].astype(jnp.float32)
    sldj = sldj_ref[...].astype(jnp.float32)

    x1_ref[...] = x1.astype(x1_ref.dtype)
    pdj_out_ref[...] = (pdj * jnp.exp(sum_log_sj)).astype(pdj_out_ref.dtype)
    sldj_out_ref[...] = (sldj + sum_log_sj).astype(sldj_out_ref.dtype)


# ----------------------------------------------------------------------------
# Python wrapper (mirrors the nn.Module interface)
# ----------------------------------------------------------------------------
class LogisticMapping:
    def __init__(self, input_dim: int, delta: float, s: float):
        self.input_dim = input_dim
        self.delta = float(delta)
        self.s = float(s)

    # ----- reverse: prior -> data, pure elementwise -----------------------------
    def _reverse(self, x):
        orig_shape = x.shape
        if x.ndim >= 2:
            x2 = x.reshape(-1, orig_shape[-1])   # collapse leading dims (layout-free)
        else:
            x2 = x.reshape(1, -1)
        B2, D2 = x2.shape
        tb = _pick_tb(B2, D2, x2.dtype.itemsize)
        n = B2 * D2

        y2 = pl.pallas_call(
            functools.partial(_reverse_kernel, delta=self.delta, s=self.s),
            out_shape=jax.ShapeDtypeStruct((B2, D2), x.dtype),
            grid=(pl.cdiv(B2, tb),),
            in_specs=[pl.BlockSpec((tb, D2), lambda i: (i, 0))],
            out_specs=pl.BlockSpec((tb, D2), lambda i: (i, 0)),
            compiler_params=pltpu.CompilerParams(
                dimension_semantics=("parallel",)),
            cost_estimate=pl.CostEstimate(
                flops=3 * n,
                transcendentals=n,
                bytes_accessed=2 * n * x2.dtype.itemsize),
        )(x2)
        return y2.reshape(orig_shape)

    # ----- forward: data -> prior, elementwise + per-row lane reduction ---------
    def _forward(self, x, pdj, sldj):
        B, D = x.shape
        assert D == self.input_dim
        tb = _pick_tb(B, D, x.dtype.itemsize)
        n = B * D

        x1, pdj_out, sldj_out = pl.pallas_call(
            functools.partial(_forward_kernel, delta=self.delta, s=self.s),
            out_shape=(
                jax.ShapeDtypeStruct((B, D), x.dtype),
                jax.ShapeDtypeStruct((B, 1), pdj.dtype),
                jax.ShapeDtypeStruct((B, 1), sldj.dtype),
            ),
            grid=(pl.cdiv(B, tb),),
            in_specs=[
                pl.BlockSpec((tb, D), lambda i: (i, 0)),
                pl.BlockSpec((tb, 1), lambda i: (i, 0)),
                pl.BlockSpec((tb, 1), lambda i: (i, 0)),
            ],
            out_specs=(
                pl.BlockSpec((tb, D), lambda i: (i, 0)),
                pl.BlockSpec((tb, 1), lambda i: (i, 0)),
                pl.BlockSpec((tb, 1), lambda i: (i, 0)),
            ),
            compiler_params=pltpu.CompilerParams(
                dimension_semantics=("parallel",)),
            cost_estimate=pl.CostEstimate(
                flops=8 * n + 6 * B,
                transcendentals=2 * n + B,
                bytes_accessed=2 * n * x.dtype.itemsize + 16 * B),
        )(x, pdj, sldj)
        return x1, pdj_out, sldj_out

    def __call__(self, x, pdj=None, sldj=None, reverse=True):
        if reverse:
            return self._reverse(x), pdj, sldj
        return self._forward(x, pdj, sldj)


# ----------------------------------------------------------------------------
# Pure-JAX reference (mirrors the PyTorch module exactly)
# ----------------------------------------------------------------------------
def _ref(x, pdj, sldj, delta, s, reverse):
    if reverse:
        e = jnp.exp(x * 2.0 / s)
        x1 = (e * (1.0 + delta) - delta) / (1.0 + e)
        return x1, pdj, sldj
    x1 = (jnp.log(x + delta) - jnp.log(1.0 + delta - x)) * s / 2.0
    sj = jnp.abs(1.0 / (x + delta) + 1.0 / (1.0 - x + delta)) * s / 2.0
    pdj = pdj * jnp.prod(sj, axis=-1, keepdims=True)
    sldj = sldj + jnp.sum(jnp.log(sj), axis=-1, keepdims=True)
    return x1, pdj, sldj


if __name__ == "__main__":
    key = jax.random.PRNGKey(0)
    k1, k2, k3 = jax.random.split(key, 3)

    # Non-multiple-of-8 batch exercises the ragged (masked) tail block path.
    B, D = 10, 16           # batch, input_dim
    delta, s = 0.05, 2.0    # deterministic "constructor" args

    mapping = LogisticMapping(input_dim=D, delta=delta, s=s)

    # reverse direction: x in (-inf, inf)
    x_rev = jax.random.normal(k1, (B, D), dtype=jnp.float32)
    y_rev, _, _ = mapping(x_rev, reverse=True)
    jax.block_until_ready(y_rev)
    y_rev_ref, _, _ = _ref(x_rev, None, None, delta, s, reverse=True)
    assert jnp.allclose(y_rev, y_rev_ref, atol=1e-5, rtol=1e-5)

    # forward direction: x in (0, 1), with pdj / sldj accumulators
    x_fwd = jax.random.uniform(k2, (B, D), dtype=jnp.float32,
                               minval=0.05, maxval=0.95)
    pdj0 = jnp.ones((B, 1), dtype=jnp.float32)
    sldj0 = jax.random.normal(k3, (B, 1), dtype=jnp.float32) * 0.1

    x1, pdj1, sldj1 = mapping(x_fwd, pdj0, sldj0, reverse=False)
    jax.block_until_ready((x1, pdj1, sldj1))

    x1_r, pdj_r, sldj_r = _ref(x_fwd, pdj0, sldj0, delta, s, reverse=False)
    assert jnp.allclose(x1, x1_r, atol=1e-5, rtol=1e-5)
    assert jnp.allclose(pdj1, pdj_r, atol=1e-4, rtol=1e-4)
    assert jnp.allclose(sldj1, sldj_r, atol=1e-4, rtol=1e-4)

    print("KERNEL_OK")
</pallas_src>

<mosaic_0001>
module attributes {stable_mosaic.version = 11 : i64} {
  func.func @_reverse_kernel(%arg0: i32, %arg1: memref<16x16xf32, #tpu.memory_space<vmem>>, %arg2: memref<16x16xf32, #tpu.memory_space<vmem>>) attributes {dimension_semantics = [#tpu.dimension_semantics<parallel>], iteration_bounds = array<i64: 1>, scalar_prefetch = 0 : i64, scratch_operands = 0 : i64, tpu.core_type = #tpu.core_type<tc>, window_params = [{transform_indices = @transform_0, window_bounds = array<i64: 16, 16>}, {transform_indices = @transform_1, window_bounds = array<i64: 16, 16>}]} {
    %c0 = arith.constant 0 : index
    %c0_0 = arith.constant 0 : index
    %0 = vector.load %arg1[%c0, %c0_0] : memref<16x16xf32, #tpu.memory_space<vmem>>, vector<16x16xf32>
    %cst = arith.constant 5.000000e-01 : f32
    %1 = vector.broadcast %cst : f32 to vector<16x16xf32>
    %2 = arith.mulf %0, %1 : vector<16x16xf32>
    %3 = math.tanh %2 : vector<16x16xf32>
    %cst_1 = arith.constant 5.500000e-01 : f32
    %4 = vector.broadcast %cst_1 : f32 to vector<16x16xf32>
    %5 = arith.mulf %4, %3 : vector<16x16xf32>
    %cst_2 = arith.constant 5.000000e-01 : f32
    %6 = vector.broadcast %cst_2 : f32 to vector<16x16xf32>
    %7 = arith.addf %6, %5 : vector<16x16xf32>
    %c0_3 = arith.constant 0 : index
    %c0_4 = arith.constant 0 : index
    %8 = vector.load %arg2[%c0_3, %c0_4] : memref<16x16xf32, #tpu.memory_space<vmem>>, vector<16x16xf32>
    tpu.vector_store %arg2[%c0_3, %c0_4], %7 {strides = array<i32>} : memref<16x16xf32, #tpu.memory_space<vmem>>, vector<16x16xf32>,
    return
  }
  func.func @transform_0(%arg0: i32) -> (i32, i32) {
    %c0_i32 = arith.constant 0 : i32
    %c0_i32_0 = arith.constant 0 : i32
    return %arg0, %c0_i32 : i32, i32
  }
  func.func @transform_1(%arg0: i32) -> (i32, i32) {
    %c0_i32 = arith.constant 0 : i32
    %c0_i32_0 = arith.constant 0 : i32
    return %arg0, %c0_i32 : i32, i32
  }
}

</mosaic_0001>

<llo_original>
// kernel: tpu_custom_call.1
$region0: #{tpu_custom_call.1}
  #allocation0 [shape = 'u32[]', space=smem, size = 0x4, offset = 0x4, fixed_abs, tag = 'smem constant byte address 0x4 - core index']
  #allocation1 [shape = 'u32[144,128]{1,0:T(1,128)}', space=vmem, size = 0x12000, scoped, tag = 'internal scratch']
  %s0 = inlined_call_operand.hbm [shape: f32[10,16], index: 0, kind: input, shape index: {}]
  %s1 = inlined_call_operand.hbm [shape: f32[10,16], index: 1, kind: output, shape index: {}]
  %s2 = sld [smem:[#allocation0]]
  $region18: #{tpu_custom_call.1} parent=0
    _
  %s4 = ssub.s32 1, %s2
  %s5 = scalar_select 0, %s4, %s2
  $region1: #{tpu_custom_call.1} parent=0
    #allocation2 [shape = 'u8[8192]{0}', space=vmem, size = 0x2000, scoped, tag = 'input window, operand 0, single buffered']
    #allocation3 [shape = 's32[1]{0}', space=sflag, size = 0x4, scoped, tag = 'scoped memory for tpu_custom_call.1']
    #allocation4 [shape = 's32[1]{0}', space=sflag, size = 0x4, scoped, tag = 'scoped memory for tpu_custom_call.1']
    #allocation5 [shape = 'u8[8192]{0}', space=vmem, size = 0x2000, scoped, tag = 'output window, operand 0, single buffered']
    %6 = vsyncpa [#allocation3], 0
    %7 = vsyncpa [#allocation4], 0
    // Predicated region
    $region2: #{tpu_custom_call.1} parent=1 // pred_check
      _
    $region3: #{tpu_custom_call.1} parent=1 // pred_check_branch
      %9 = sbr.rel (0) target = $region5
    $region4: #{tpu_custom_call.1} parent=1 // pred_region
      %s11 = ssub.s32 256, 256
      %12 = vsyncadd [#allocation3], %s11
      %s13 = sshll.u32 [#allocation2], 4
      %s14 = int_to_ptr.vmem [resolvable:$true] %s13
      %19 = dma.hbm_to_vmem [thread:$0]  %s0, 256, %s14, [#allocation3], 128, 128, 8
    $region5: #{tpu_custom_call.1} parent=1 // pred_fallthru
      _
    // Predicated region
    $region6: #{tpu_custom_call.1} parent=1 // pred_check
      _
    $region7: #{tpu_custom_call.1} parent=1 // pred_check_branch
      %21 = sbr.rel (0) target = $region9
    $region8: #{tpu_custom_call.1} parent=1 // pred_region
      %22 = dma.done [#allocation3], 256
    $region9: #{tpu_custom_call.1} parent=1 // pred_fallthru
      _
    %v23 = vld [vmem:[#allocation2] sm:$0xff]
    %v24 = vld [vmem:[#allocation2 + $0x8] sm:$0xff]
    %v25 = vmul.f32 %v23, 0.5
    %v26 = vmul.f32 %v24, 0.5
    %v27 = vtanh.pop %v25
    %v28 = vtanh.pop %v26
    %v29 = vmul.f32 %v27, 0.55
    %v30 = vmul.f32 %v28, 0.55
    %v31 = vadd.f32 %v29, 0.5
    %v32 = vadd.f32 %v30, 0.5
    %vm33 = vcmask 130048
    %34 = vst.msk [vmem:[#allocation5] sm:$0xff] %vm33, %v31
    %35 = vst.msk [vmem:[#allocation5 + $0x8] sm:$0xff] %vm33, %v32
    // Predicated region
    $region10: #{tpu_custom_call.1} parent=1 // pred_check
      _
    $region11: #{tpu_custom_call.1} parent=1 // pred_check_branch
      %37 = sbr.rel (0) target = $region13
    $region12: #{tpu_custom_call.1} parent=1 // pred_region
      %s39 = ssub.s32 256, 256
      %40 = vsyncadd [#allocation4], %s39
      %s41 = sshll.u32 [#allocation5], 4
      %s42 = int_to_ptr.vmem [resolvable:$true] %s41
      %47 = dma.vmem_to_hbm [thread:$0]  %s42, 256, %s1, [#allocation4], 128, 128, 8
    $region13: #{tpu_custom_call.1} parent=1 // pred_fallthru
      _
    // Predicated region
    $region14: #{tpu_custom_call.1} parent=1 // pred_check
      _
    $region15: #{tpu_custom_call.1} parent=1 // pred_check_branch
      %49 = sbr.rel (0) target = $region17
    $region16: #{tpu_custom_call.1} parent=1 // pred_region
      %50 = dma.done [#allocation4], 256
    $region17: #{tpu_custom_call.1} parent=1 // pred_fallthru
      _
    %51 = vsyncpa [#allocation3], 1
    %52 = vsyncpa [#allocation4], 1

</llo_original>
